<compile_context>
chip_gen: v5e
topology: v5e:2x2
jax: 0.10.0
libtpu: 0.0.40
codegen_flags: <defaults>
</compile_context>

<pallas_src>
import functools
import math

import jax
import jax.numpy as jnp
from jax.experimental import pallas as pl
from jax.experimental.pallas import tpu as pltpu


# ----------------------------------------------------------------------------
# pe buffer (mirrors PositionalEncoding.__init__'s registered buffer)
# ----------------------------------------------------------------------------
def build_pe_buffer(d_model, max_len=5000, dtype=jnp.float32):
    position = jnp.arange(max_len, dtype=jnp.float32)[:, None]           # [L, 1]
    div_term = jnp.exp(
        jnp.arange(0, d_model, 2, dtype=jnp.float32)
        * -(math.log(10000.0) / d_model))                                # [D/2]
    angles = position * div_term                                         # [L, D/2]
    pe = jnp.zeros((max_len, d_model), jnp.float32)
    pe = pe.at[:, 0::2].set(jnp.sin(angles))
    pe = pe.at[:, 1::2].set(jnp.cos(angles))
    return pe.astype(dtype)                                              # [L, D]


# ----------------------------------------------------------------------------
# kernels (pure VPU adds; all DMA handled by BlockSpecs)
# ----------------------------------------------------------------------------
def _pe_add_bcast_kernel(x_ref, pe_ref, o_ref):
    # x_ref/o_ref: (B, tile_cols)   pe_ref: (1, tile_cols) -> sublane broadcast
    o_ref[...] = x_ref[...] + pe_ref[...]


def _pe_add_rows_kernel(x_ref, pe_ref, o_ref):
    # x_ref/o_ref: (tile_t, D) (batch dim squeezed)   pe_ref: (tile_t, D)
    o_ref[...] = x_ref[...] + pe_ref[...]


# ----------------------------------------------------------------------------
# tiling helper
# ----------------------------------------------------------------------------
def _largest_divisor_tile(n, quantum, cap):
    """Largest multiple of `quantum` that divides n and is <= cap (0 if none)."""
    cap = max(cap, quantum)
    start = (min(n, cap) // quantum) * quantum
    for t in range(start, 0, -quantum):
        if n % t == 0:
            return t
    return 0


# ----------------------------------------------------------------------------
# forward paths
# ----------------------------------------------------------------------------
def _forward_row_tiles(x, pe, tile_t):
    """D is lane-dense (multiple of 128): tile over sequence rows.

    Grid = (seq tiles, batch) with batch innermost; the pe index_map only
    depends on the seq-tile index, so its block is reused (not re-fetched)
    across consecutive batch steps.
    """
    B, T, D = x.shape
    tt = _largest_divisor_tile(T, 8, tile_t)
    grid = (T // tt, B)
    return pl.pallas_call(
        _pe_add_rows_kernel,
        out_shape=jax.ShapeDtypeStruct((B, T, D), x.dtype),
        grid=grid,
        in_specs=[
            # x rows for batch b, seq tile s (batch dim squeezed out).
            pl.BlockSpec((None, tt, D), lambda s, b: (b, s, 0)),
            # pe rows: full [max_len, D] buffer, window picked by index_map,
            # constant across the (innermost) batch axis -> reused.
            pl.BlockSpec((tt, D), lambda s, b: (s, 0)),
        ],
        out_specs=pl.BlockSpec((None, tt, D), lambda s, b: (b, s, 0)),
        input_output_aliases={0: 0},            # in-place over x's buffer
        compiler_params=pltpu.CompilerParams(
            dimension_semantics=("parallel", "parallel")),
    )(x, pe)


def _forward_lane_dense(x, pe, tile_cols):
    """D < 128: flatten (T, D) -> T*D so loads/stores are lane-dense."""
    B, T, D = x.shape
    L = T * D
    x_flat = x.reshape(B, L)
    # Contiguous reshape of the FULL buffer (bitcast under jit, no slice copy);
    # the (T*D)-element window is selected by the BlockSpec index_map below.
    pe_flat = pe.reshape(1, pe.shape[0] * pe.shape[1])
    tile = _largest_divisor_tile(L, 128, tile_cols)
    grid = (L // tile,)
    out_flat = pl.pallas_call(
        _pe_add_bcast_kernel,
        out_shape=jax.ShapeDtypeStruct((B, L), x.dtype),
        grid=grid,
        in_specs=[
            pl.BlockSpec((B, tile), lambda c: (0, c)),   # x: all batch rows
            pl.BlockSpec((1, tile), lambda c: (0, c)),   # pe: once per col tile
        ],
        out_specs=pl.BlockSpec((B, tile), lambda c: (0, c)),
        input_output_aliases={0: 0},            # in-place over x's buffer
        compiler_params=pltpu.CompilerParams(
            dimension_semantics=("parallel",)),
    )(x_flat, pe_flat)
    return out_flat.reshape(B, T, D)


def _forward_fallback(x, pe):
    """Odd shapes (T*D not a multiple of 128): single full-array block."""
    B, T, D = x.shape
    pe_slice = pe[:T].reshape(1, T, D)
    return pl.pallas_call(
        _pe_add_bcast_kernel if False else (lambda xr, pr, orf: None),  # unused
        out_shape=jax.ShapeDtypeStruct((B, T, D), x.dtype),
    )(x, pe_slice)


def _forward_fallback(x, pe):  # noqa: F811  (simple, correct definition)
    B, T, D = x.shape
    pe_slice = pe[:T].reshape(1, T, D)

    def _kernel(x_ref, pe_ref, o_ref):
        o_ref[...] = x_ref[...] + pe_ref[...]

    return pl.pallas_call(
        _kernel,
        out_shape=jax.ShapeDtypeStruct((B, T, D), x.dtype),
        in_specs=[
            pl.BlockSpec((B, T, D), lambda: (0, 0, 0)),
            pl.BlockSpec((1, T, D), lambda: (0, 0, 0)),
        ],
        out_specs=pl.BlockSpec((B, T, D), lambda: (0, 0, 0)),
        input_output_aliases={0: 0},
    )(x, pe_slice)


@functools.partial(jax.jit, static_argnames=("tile_cols", "tile_t"))
def positional_encoding_forward(x, pe, *, tile_cols=65536, tile_t=512):
    """x: [B, T, D] float32; pe: [max_len, D] buffer.  Returns [B, T, D].

    tile_cols: flattened-axis tile (elements) for the D<128 path.
    tile_t:    sequence-row tile for the lane-dense-D path.
    Defaults keep per-tile VMEM (with double buffering) at a few MiB — safe on
    v7x's 32 MiB scoped default; raise on v5e/v6e if desired.
    """
    B, T, D = x.shape
    if D % 128 == 0 and T % 8 == 0:
        return _forward_row_tiles(x, pe, tile_t)
    if (T * D) % 128 == 0:
        return _forward_lane_dense(x, pe, tile_cols)
    return _forward_fallback(x, pe)


def positional_encoding_ref(x, pe):
    """Pure-JAX reference mirroring the PyTorch forward (eval mode)."""
    T = x.shape[1]
    return x + pe[None, :T, :]


# ----------------------------------------------------------------------------
# self-test
# ----------------------------------------------------------------------------
if __name__ == "__main__":
    key = jax.random.PRNGKey(0)
    k1, k2 = jax.random.split(key)

    # --- Test 1: module-spec toy shape (d_model=32 < 128 -> lane-dense path) ---
    B, T, D = 2, 8, 32
    x = jax.random.normal(k1, (B, T, D), jnp.float32)
    pe = build_pe_buffer(D, max_len=5000)
    ref = positional_encoding_ref(x, pe)                 # compute ref first
    out = positional_encoding_forward(x, pe, tile_cols=128)  # grid of 2 col tiles
    jax.block_until_ready(out)
    assert out.shape == (B, T, D)
    err = float(jnp.max(jnp.abs(out - ref)))
    assert jnp.allclose(out, ref, atol=1e-6, rtol=1e-6), f"max abs err = {err}"

    # --- Test 2: lane-dense d_model (row-tiled path, batch-innermost pe reuse) ---
    B2, T2, D2 = 2, 32, 128
    x2 = jax.random.normal(k2, (B2, T2, D2), jnp.float32)
    pe2 = build_pe_buffer(D2, max_len=128)
    ref2 = positional_encoding_ref(x2, pe2)
    out2 = positional_encoding_forward(x2, pe2, tile_t=8)     # grid (4 seq, 2 batch)
    jax.block_until_ready(out2)
    assert out2.shape == (B2, T2, D2)
    err2 = float(jnp.max(jnp.abs(out2 - ref2)))
    assert jnp.allclose(out2, ref2, atol=1e-6, rtol=1e-6), f"max abs err = {err2}"

    print("KERNEL_OK")
</pallas_src>

<mosaic_0001>
module attributes {stable_mosaic.version = 11 : i64} {
  func.func @_pe_add_bcast_kernel(%arg0: i32, %arg1: memref<2x128xf32, #tpu.memory_space<vmem>>, %arg2: memref<1x128xf32, #tpu.memory_space<vmem>>, %arg3: memref<2x128xf32, #tpu.memory_space<vmem>>) attributes {dimension_semantics = [#tpu.dimension_semantics<parallel>], iteration_bounds = array<i64: 2>, scalar_prefetch = 0 : i64, scratch_operands = 0 : i64, tpu.core_type = #tpu.core_type<tc>, window_params = [{transform_indices = @transform_0, window_bounds = array<i64: 2, 128>}, {transform_indices = @transform_1, window_bounds = array<i64: 1, 128>}, {transform_indices = @transform_2, window_bounds = array<i64: 2, 128>}]} {
    %c0 = arith.constant 0 : index
    %c0_0 = arith.constant 0 : index
    %0 = vector.load %arg1[%c0, %c0_0] : memref<2x128xf32, #tpu.memory_space<vmem>>, vector<2x128xf32>
    %c0_1 = arith.constant 0 : index
    %c0_2 = arith.constant 0 : index
    %1 = vector.load %arg2[%c0_1, %c0_2] : memref<1x128xf32, #tpu.memory_space<vmem>>, vector<1x128xf32>
    %2 = vector.broadcast %1 : vector<1x128xf32> to vector<2x128xf32>
    %3 = arith.addf %0, %2 : vector<2x128xf32>
    %c0_3 = arith.constant 0 : index
    %c0_4 = arith.constant 0 : index
    %4 = vector.load %arg3[%c0_3, %c0_4] : memref<2x128xf32, #tpu.memory_space<vmem>>, vector<2x128xf32>
    tpu.vector_store %arg3[%c0_3, %c0_4], %3 {strides = array<i32>} : memref<2x128xf32, #tpu.memory_space<vmem>>, vector<2x128xf32>,
    return
  }
  func.func @transform_0(%arg0: i32) -> (i32, i32) {
    %c0_i32 = arith.constant 0 : i32
    %c0_i32_0 = arith.constant 0 : i32
    return %c0_i32, %arg0 : i32, i32
  }
  func.func @transform_1(%arg0: i32) -> (i32, i32) {
    %c0_i32 = arith.constant 0 : i32
    %c0_i32_0 = arith.constant 0 : i32
    return %c0_i32, %arg0 : i32, i32
  }
  func.func @transform_2(%arg0: i32) -> (i32, i32) {
    %c0_i32 = arith.constant 0 : i32
    %c0_i32_0 = arith.constant 0 : i32
    return %c0_i32, %arg0 : i32, i32
  }
}

</mosaic_0001>

<llo_original>
// kernel: positional_encoding_forward.1
$region0: #{positional_encoding_forward.1}
  #allocation0 [shape = 'u32[]', space=smem, size = 0x4, offset = 0x4, fixed_abs, tag = 'smem constant byte address 0x4 - core index']
  #allocation1 [shape = 'u32[72,128]{1,0:T(1,128)}', space=vmem, size = 0x9000, scoped, tag = 'internal scratch']
  %s0 = inlined_call_operand.vmem [shape: f32[2,256], index: 0, kind: input, shape index: {}, may-alias: {0,2}]
  %s1 = inlined_call_operand.vmem [shape: f32[1,160000], index: 1, kind: input, shape index: {}]
  %s2 = inlined_call_operand.vmem [shape: f32[2,256], index: 2, kind: output, shape index: {}, may-alias: {0,2}]
  %s3 = sld [smem:[#allocation0]]
  $region41: #{positional_encoding_forward.1} parent=0
    _
  %s5 = ssub.s32 1, %s3
  %s6 = scalar_select 0, %s5, %s3
  loop: start=0, step=1, limit=4
  $region2: #{positional_encoding_forward.1} parent=0 // loop_pre_header
    _
  $region3: #{positional_encoding_forward.1} parent=0 // loop_header
    %s8 = sphi 0, %s12
    %p9 = scmp.ge.s32.totalorder %s8, 4
    %s18 = sphi 0, %s20
    %s21 = sphi 0, %s18
    %s22 = sphi 0, %s21
    %s38 = sphi 0, %s22
    %s44 = sphi 0, %s46
    %s47 = sphi 0, %s44
    %s48 = sphi 0, %s47
    %s64 = sphi 0, %s48
    %s70 = sphi 0, %s72
    %s73 = sphi 0, %s70
    %s74 = sphi 0, %s73
    %s90 = sphi 0, %s74
  $region4: #{positional_encoding_forward.1} parent=0 // loop_header_branch
    %11 = sbr.rel (%p9) target = $region8
  $region5: #{positional_encoding_forward.1} parent=0 // loop_body
    %s13 = ssub.s32 %s8, 1
    %s14 = ssub.s32 %s8, 2
    %s15 = sadd.s32 %s8, 1
    %s16 = ssub.s32 %s8, %s15
    %p17 = scmp.eq.s32.totalorder %s16, 0
    %s19 = sadd.s32 %s18, 1
    %s20 = scalar_select %p17, %s18, %s19
    %p23 = pneg %p17
    %p24 = scmp.eq.s32.totalorder %s8, 1
    %p25 = por %p23, %p24
    %p26 = scmp.ne.s32.totalorder %s18, %s21
    %p27 = scmp.eq.s32.totalorder %s8, 0
    %p28 = por %p26, %p27
    %p29 = scmp.ne.s32.totalorder %s18, %s21
    %p30 = scmp.eq.s32.totalorder %s13, 1
    %p31 = por %p29, %p30
    %p32 = scmp.ne.s32.totalorder %s21, %s22
    %p33 = scmp.eq.s32.totalorder %s13, 0
    %p34 = por %p32, %p33
    %p35 = scmp.ne.s32.totalorder %s21, %s22
    %p36 = scmp.eq.s32.totalorder %s14, 1
    %p37 = por %p35, %p36
    %p39 = scmp.ne.s32.totalorder %s22, %s38
    %p40 = scmp.eq.s32.totalorder %s14, 0
    %p41 = por %p39, %p40
    %s42 = ssub.s32 %s8, %s15
    %p43 = scmp.eq.s32.totalorder %s42, 0
    %s45 = sadd.s32 %s44, 1
    %s46 = scalar_select %p43, %s44, %s45
    %p49 = pneg %p43
    %p50 = scmp.eq.s32.totalorder %s8, 1
    %p51 = por %p49, %p50
    %p52 = scmp.ne.s32.totalorder %s44, %s47
    %p53 = scmp.eq.s32.totalorder %s8, 0
    %p54 = por %p52, %p53
    %p55 = scmp.ne.s32.totalorder %s44, %s47
    %p56 = scmp.eq.s32.totalorder %s13, 1
    %p57 = por %p55, %p56
    %p58 = scmp.ne.s32.totalorder %s47, %s48
    %p59 = scmp.eq.s32.totalorder %s13, 0
    %p60 = por %p58, %p59
    %p61 = scmp.ne.s32.totalorder %s47, %s48
    %p62 = scmp.eq.s32.totalorder %s14, 1
    %p63 = por %p61, %p62
    %p65 = scmp.ne.s32.totalorder %s48, %s64
    %p66 = scmp.eq.s32.totalorder %s14, 0
    %p67 = por %p65, %p66
    %s68 = ssub.s32 %s8, %s15
    %p69 = scmp.eq.s32.totalorder %s68, 0
    %s71 = sadd.s32 %s70, 1
    %s72 = scalar_select %p69, %s70, %s71
    %p75 = pneg %p69
    %p76 = scmp.eq.s32.totalorder %s8, 1
    %p77 = por %p75, %p76
    %p78 = scmp.ne.s32.totalorder %s70, %s73
    %p79 = scmp.eq.s32.totalorder %s8, 0
    %p80 = por %p78, %p79
    %p81 = scmp.ne.s32.totalorder %s70, %s73
    %p82 = scmp.eq.s32.totalorder %s13, 1
    %p83 = por %p81, %p82
    %p84 = scmp.ne.s32.totalorder %s73, %s74
    %p85 = scmp.eq.s32.totalorder %s13, 0
    %p86 = por %p84, %p85
    %p87 = scmp.ne.s32.totalorder %s73, %s74
    %p88 = scmp.eq.s32.totalorder %s14, 1
    %p89 = por %p87, %p88
    %p91 = scmp.ne.s32.totalorder %s74, %s90
    %p92 = scmp.eq.s32.totalorder %s14, 0
    %p93 = por %p91, %p92
    %p94 = scmp.le.s32.totalorder 1, %s8
    %p95 = scmp.lt.s32.totalorder %s8, 3
    %p96 = pnand %p94, %p95
    %p97 = pneg %p96
    // Predicated region
    $region9: #{positional_encoding_forward.1} parent=5 // pred_check
      _
    $region10: #{positional_encoding_forward.1} parent=5 // pred_check_branch
      %99 = sbr.rel (%p96) target = $region12
    $region11: #{positional_encoding_forward.1} parent=5 // pred_region
      %s100 = ssub.s32 %s8, 1
    $region12: #{positional_encoding_forward.1} parent=5 // pred_fallthru
      _
    %p101 = scmp.lt.s32.totalorder %s8, 2
    // Predicated region
    $region13: #{positional_encoding_forward.1} parent=5 // pred_check
      %p102 = pneg %p101
    $region14: #{positional_encoding_forward.1} parent=5 // pred_check_branch
      %104 = sbr.rel (%p102) target = $region16
    $region15: #{positional_encoding_forward.1} parent=5 // pred_region
      // Predicated region
      $region17: #{positional_encoding_forward.1} parent=15 // pred_check
        %p105 = pneg %p28
      $region18: #{positional_encoding_forward.1} parent=15 // pred_check_branch
        %107 = sbr.rel (%p105) target = $region20
      $region19: #{positional_encoding_forward.1} parent=15 // pred_region
        %p108 = scmp.lt.s32.totalorder %s8, 1
        %s109 = scalar_select %p108, %s8, 1
        %s110 = smul.addr %s109, 2
        %s111 = scalar_lea.vmem %s0, %s110
      $region20: #{positional_encoding_forward.1} parent=15 // pred_fallthru
        _
      // Predicated region
      $region21: #{positional_encoding_forward.1} parent=15 // pred_check
        %p112 = pneg %p54
      $region22: #{positional_encoding_forward.1} parent=15 // pred_check_branch
        %114 = sbr.rel (%p112) target = $region24
      $region23: #{positional_encoding_forward.1} parent=15 // pred_region
        %p115 = scmp.lt.s32.totalorder %s8, 1249
        %s116 = scalar_select %p115, %s8, 1249
        %s117 = scalar_lea.vmem %s1, %s116
      $region24: #{positional_encoding_forward.1} parent=15 // pred_fallthru
        _
    $region16: #{positional_encoding_forward.1} parent=5 // pred_fallthru
      _
    %p118 = scmp.le.s32.totalorder 1, %s8
    %p119 = scmp.lt.s32.totalorder %s8, 3
    %p120 = pnand %p118, %p119
    %p121 = pneg %p120
    // Predicated region
    $region25: #{positional_encoding_forward.1} parent=5 // pred_check
      _
    $region26: #{positional_encoding_forward.1} parent=5 // pred_check_branch
      %123 = sbr.rel (%p120) target = $region28
    $region27: #{positional_encoding_forward.1} parent=5 // pred_region
      %s124 = ssub.s32 %s8, 1
      %p125 = scmp.lt.s32.totalorder %s13, 1
      %s126 = scalar_select %p125, %s13, 1
      %s127 = smul.addr %s126, 2
      %s128 = scalar_lea.vmem %s0, %s127
      %p129 = pneg %p34
      %p130 = pneg %p31
      %p131 = scmp.lt.s32.totalorder %s13, 1249
      %s132 = scalar_select %p131, %s13, 1249
      %s133 = scalar_lea.vmem %s1, %s132
      %p134 = pneg %p60
      %p135 = pneg %p57
      %p136 = pneg %p86
      %p137 = pneg %p83
      %p138 = scmp.lt.s32.totalorder %s13, 1
      %s139 = scalar_select %p138, %s13, 1
      %s140 = smul.addr %s139, 2
      %s141 = scalar_lea.vmem %s2, %s140
      %p142 = scmp.lt.s32.totalorder %s13, 1
      %s143 = scalar_select %p142, %s13, 1
      %s144 = smul.addr %s143, 2
      %s145 = scalar_lea.vmem %s0, %s144
      %p146 = scmp.lt.s32.totalorder %s13, 1249
      %s147 = scalar_select %p146, %s13, 1249
      %s148 = scalar_lea.vmem %s1, %s147
      %p149 = scmp.lt.s32.totalorder %s13, 1
      %s150 = scalar_select %p149, %s13, 1
      %s151 = smul.addr %s150, 2
      %s152 = scalar_lea.vmem %s2, %s151
      %v153 = vld [vmem:[%s145] sm:$0x3]
      %v154 = vld [vmem:[%s148] sm:$0x1]
      %v156 = vperm.slane %v154, 0
      %v158 = vadd.f32 %v153, %v156
      %159 = vst [vmem:[%s152] sm:$0x3] %v158
      %p160 = scmp.lt.s32.totalorder %s13, 1
      %s161 = scalar_select %p160, %s13, 1
      %s162 = smul.addr %s161, 2
      %s163 = scalar_lea.vmem %s2, %s162
      // Predicated region
      $region29: #{positional_encoding_forward.1} parent=27 // pred_check
        %p164 = pneg %p83
      $region30: #{positional_encoding_forward.1} parent=27 // pred_check_branch
        %166 = sbr.rel (%p164) target = $region32
      $region31: #{positional_encoding_forward.1} parent=27 // pred_region
        _
      $region32: #{positional_encoding_forward.1} parent=27 // pred_fallthru
        _
    $region28: #{positional_encoding_forward.1} parent=5 // pred_fallthru
      _
    %p167 = scmp.le.s32.totalorder 2, %s8
    // Predicated region
    $region33: #{positional_encoding_forward.1} parent=5 // pred_check
      %p168 = pneg %p167
    $region34: #{positional_encoding_forward.1} parent=5 // pred_check_branch
      %170 = sbr.rel (%p168) target = $region36
    $region35: #{positional_encoding_forward.1} parent=5 // pred_region
      %s171 = ssub.s32 %s8, 2
      // Predicated region
      $region37: #{positional_encoding_forward.1} parent=35 // pred_check
        %p172 = pneg %p89
      $region38: #{positional_encoding_forward.1} parent=35 // pred_check_branch
        %174 = sbr.rel (%p172) target = $region40
      $region39: #{positional_encoding_forward.1} parent=35 // pred_region
        %p175 = scmp.lt.s32.totalorder %s14, 1
        %s176 = scalar_select %p175, %s14, 1
        %s177 = smul.addr %s176, 2
        %s178 = scalar_lea.vmem %s2, %s177
      $region40: #{positional_encoding_forward.1} parent=35 // pred_fallthru
        _
    $region36: #{positional_encoding_forward.1} parent=5 // pred_fallthru
      _
  $region6: #{positional_encoding_forward.1} parent=0 // loop_footer
    %s12 = sadd.s32 1, %s8
  $region7: #{positional_encoding_forward.1} parent=0 // loop_footer_branch
    %7 = sbr.rel target = $region3
  $region8: #{positional_encoding_forward.1} parent=0 // loop_exit
    _

</llo_original>
